<compile_context>
chip_gen: v5e
topology: v5e:2x2
jax: 0.10.0
libtpu: 0.0.40
codegen_flags: <defaults>
</compile_context>

<pallas_src>
import functools

import jax
import jax.numpy as jnp
from jax.experimental import pallas as pl
from jax.experimental.pallas import tpu as pltpu

_LANES = 128                           # full vreg lane width (unmasked stores)
_TARGET_BLOCK_BYTES = 4 * 1024 * 1024  # ~4 MiB per block: DMA time >> step overhead
_VMEM_LIMIT_BYTES = 32 * 1024 * 1024   # headroom for 4 live buffers on all gens


def _identity_kernel(x_ref, o_ref):
    # BaseModel.forward performs no transform: pure pass-through.
    o_ref[...] = x_ref[...]


def _identity_pallas_2d(x2d):
    """Lane-dense (rows, 128) streaming identity with aliased output."""
    rows, lanes = x2d.shape
    itemsize = x2d.dtype.itemsize
    pack = max(1, 32 // itemsize)          # sublane pack factor: 8/16/32
    cap_rows = max(pack, (_TARGET_BLOCK_BYTES // (lanes * itemsize)) // pack * pack)
    tile_rows = min(rows, cap_rows)        # either pack-aligned or == full rows
    grid = (pl.cdiv(rows, tile_rows),)
    nbytes = x2d.size * itemsize
    return pl.pallas_call(
        _identity_kernel,
        out_shape=jax.ShapeDtypeStruct((rows, lanes), x2d.dtype),
        grid=grid,
        in_specs=[pl.BlockSpec((tile_rows, lanes), lambda i: (i, 0))],
        out_specs=pl.BlockSpec((tile_rows, lanes), lambda i: (i, 0)),
        input_output_aliases={0: 0},       # output reuses (donated) input buffer
        compiler_params=pltpu.CompilerParams(
            dimension_semantics=("parallel",),
            vmem_limit_bytes=_VMEM_LIMIT_BYTES,
        ),
        cost_estimate=pl.CostEstimate(
            flops=0, transcendentals=0, bytes_accessed=2 * nbytes),
    )(x2d)


def _identity_pallas_1d(flat):
    """Ragged fallback: 1-D blocks (last block masked), no pad/slice copies."""
    (n,) = flat.shape
    itemsize = flat.dtype.itemsize
    block = min(n, max(_LANES, (_TARGET_BLOCK_BYTES // itemsize) // _LANES * _LANES))
    grid = (pl.cdiv(n, block),)
    nbytes = n * itemsize
    return pl.pallas_call(
        _identity_kernel,
        out_shape=jax.ShapeDtypeStruct((n,), flat.dtype),
        grid=grid,
        in_specs=[pl.BlockSpec((block,), lambda i: (i,))],
        out_specs=pl.BlockSpec((block,), lambda i: (i,)),
        input_output_aliases={0: 0},
        compiler_params=pltpu.CompilerParams(
            dimension_semantics=("parallel",),
            vmem_limit_bytes=_VMEM_LIMIT_BYTES,
        ),
        cost_estimate=pl.CostEstimate(
            flops=0, transcendentals=0, bytes_accessed=2 * nbytes),
    )(flat)


@functools.partial(jax.jit, donate_argnums=0)
def base_model_forward(x):
    """Pallas equivalent of BaseModel.forward (a no-op identity)."""
    orig_shape = x.shape
    total = x.size
    if total == 0:
        return x
    if total % _LANES == 0:
        # Lane-dense factorization of the original buffer (reshape is a
        # bitcast: no padding, no extra HBM copies, alias chain preserved).
        rows = total // _LANES
        out2d = _identity_pallas_2d(x.reshape(rows, _LANES))
        return out2d.reshape(orig_shape)
    # Sizes not divisible by 128: blocked 1-D copy, partial final block.
    out_flat = _identity_pallas_1d(x.reshape(total))
    return out_flat.reshape(orig_shape)


# TODO(synk): load / save / update abstract hooks and save_network /
# load_network (torch.save / torch.load checkpoint file I/O) are host-side
# Python with no Pallas equivalent; not implemented.


if __name__ == "__main__":
    key = jax.random.PRNGKey(0)
    # Small NCHW input consistent with a generic image-model base class.
    x = jax.random.normal(key, (2, 4, 16, 16), dtype=jnp.float32)
    x_expected = jnp.array(x)   # keep a copy: x itself is donated below

    y = base_model_forward(x)
    jax.block_until_ready(y)

    # Identity semantics check (forward performs no transform).
    assert y.shape == x_expected.shape and y.dtype == x_expected.dtype
    assert bool(jnp.allclose(y, x_expected))

    print("KERNEL_OK")
</pallas_src>

<mosaic_0001>
module attributes {stable_mosaic.version = 11 : i64} {
  func.func @_identity_kernel(%arg0: i32, %arg1: memref<16x128xf32, #tpu.memory_space<vmem>>, %arg2: memref<16x128xf32, #tpu.memory_space<vmem>>) attributes {dimension_semantics = [#tpu.dimension_semantics<parallel>], iteration_bounds = array<i64: 1>, scalar_prefetch = 0 : i64, scratch_operands = 0 : i64, tpu.core_type = #tpu.core_type<tc>, window_params = [{transform_indices = @transform_0, window_bounds = array<i64: 16, 128>}, {transform_indices = @transform_1, window_bounds = array<i64: 16, 128>}]} {
    %c0 = arith.constant 0 : index
    %c0_0 = arith.constant 0 : index
    %0 = vector.load %arg1[%c0, %c0_0] : memref<16x128xf32, #tpu.memory_space<vmem>>, vector<16x128xf32>
    %c0_1 = arith.constant 0 : index
    %c0_2 = arith.constant 0 : index
    %1 = vector.load %arg2[%c0_1, %c0_2] : memref<16x128xf32, #tpu.memory_space<vmem>>, vector<16x128xf32>
    tpu.vector_store %arg2[%c0_1, %c0_2], %0 {strides = array<i32>} : memref<16x128xf32, #tpu.memory_space<vmem>>, vector<16x128xf32>,
    return
  }
  func.func @transform_0(%arg0: i32) -> (i32, i32) {
    %c0_i32 = arith.constant 0 : i32
    %c0_i32_0 = arith.constant 0 : i32
    return %arg0, %c0_i32 : i32, i32
  }
  func.func @transform_1(%arg0: i32) -> (i32, i32) {
    %c0_i32 = arith.constant 0 : i32
    %c0_i32_0 = arith.constant 0 : i32
    return %arg0, %c0_i32 : i32, i32
  }
}

</mosaic_0001>

<llo_original>
// kernel: base_model_forward.1
$region0: #{base_model_forward.1}
  #allocation0 [shape = 'u32[]', space=smem, size = 0x4, offset = 0x4, fixed_abs, tag = 'smem constant byte address 0x4 - core index']
  #allocation1 [shape = 'u32[72,128]{1,0:T(1,128)}', space=vmem, size = 0x9000, scoped, tag = 'internal scratch']
  %s0 = inlined_call_operand.vmem [shape: f32[16,128], index: 0, kind: input, shape index: {}, may-alias: {0,1}]
  %s1 = inlined_call_operand.vmem [shape: f32[16,128], index: 1, kind: output, shape index: {}, may-alias: {0,1}]
  %s2 = sld [smem:[#allocation0]]
  $region14: #{base_model_forward.1} parent=0
    _
  %s4 = ssub.s32 1, %s2
  %s5 = scalar_select 0, %s4, %s2
  // Predicated region
  $region2: #{base_model_forward.1} parent=0 // pred_check
    _
  $region3: #{base_model_forward.1} parent=0 // pred_check_branch
    %7 = sbr.rel (0) target = $region5
  $region4: #{base_model_forward.1} parent=0 // pred_region
    _
  $region5: #{base_model_forward.1} parent=0 // pred_fallthru
    _
  %v8 = vld [vmem:[%s0] sm:$0xff]
  %v9 = vld [vmem:[%s0 + $0x8] sm:$0xff]
  %10 = vst [vmem:[%s1] sm:$0xff] %v8
  %11 = vst [vmem:[%s1 + $0x8] sm:$0xff] %v9
  // Predicated region
  $region6: #{base_model_forward.1} parent=0 // pred_check
    _
  $region7: #{base_model_forward.1} parent=0 // pred_check_branch
    %13 = sbr.rel (0) target = $region9
  $region8: #{base_model_forward.1} parent=0 // pred_region
    _
  $region9: #{base_model_forward.1} parent=0 // pred_fallthru
    _
  // Predicated region
  $region10: #{base_model_forward.1} parent=0 // pred_check
    _
  $region11: #{base_model_forward.1} parent=0 // pred_check_branch
    %15 = sbr.rel (0) target = $region13
  $region12: #{base_model_forward.1} parent=0 // pred_region
    _
  $region13: #{base_model_forward.1} parent=0 // pred_fallthru
    _

</llo_original>
